<compile_context>
chip_gen: v7x
topology: tpu7x:2x2x1
jax: 0.10.0
libtpu: 0.0.40
codegen_flags: <defaults>
</compile_context>

<pallas_src>
import math
import functools

import jax
import jax.numpy as jnp
from jax.experimental import pallas as pl
from jax.experimental.pallas import tpu as pltpu


# ----------------------------------------------------------------------------
# parameter setup (plain JAX, one-off)
# ----------------------------------------------------------------------------
def _build_pe_table(dim: int, max_len: int) -> jnp.ndarray:
    """Deterministic sinusoidal table, shape (max_len, dim), float32."""
    if dim % 2 != 0:
        raise ValueError(
            "Cannot use sin/cos positional encoding with odd dim "
            "(got dim={:d})".format(dim)
        )
    position = jnp.arange(0, max_len, dtype=jnp.float32)[:, None]          # (L, 1)
    div_term = jnp.exp(
        jnp.arange(0, dim, 2, dtype=jnp.float32) * -(math.log(10000.0) / dim)
    )                                                                       # (dim/2,)
    pe = jnp.zeros((max_len, dim), dtype=jnp.float32)
    pe = pe.at[:, 0::2].set(jnp.sin(position * div_term))
    pe = pe.at[:, 1::2].set(jnp.cos(position * div_term))
    return pe


# ----------------------------------------------------------------------------
# kernels
# ----------------------------------------------------------------------------
def _pos_enc_kernel(emb_ref, pe_ref, out_ref, *, scale):
    # emb_ref/out_ref: (TS, B, D) block;  pe_ref: (TS, D) or (1, 1, D) block.
    emb = emb_ref[...]
    pe = pe_ref[...]
    if pe.ndim == 2:                      # (TS, D) -> broadcast over batch
        pe = pe[:, None, :]
    # `scale` is a python float (weak type): the math stays in emb's dtype,
    # so bf16 inputs never get silently promoted to f32.
    out_ref[...] = (emb * scale + pe).astype(out_ref.dtype)
    # TODO(synk): nn.Dropout(p=0.1) is identity in eval mode; training-mode
    # dropout would use pltpu.prng_seed / pltpu.prng_random_bits here.


def _pos_enc_step_kernel(step_ref, emb_ref, pe_ref, out_ref, *, scale):
    # step_ref is only consumed by the pe index_map (scalar prefetch).
    del step_ref
    _pos_enc_kernel(emb_ref, pe_ref, out_ref, scale=scale)


# ----------------------------------------------------------------------------
# wrapper
# ----------------------------------------------------------------------------
_VMEM_LIMIT_BYTES = 32 * 1024 * 1024       # safe on v5e / v6e / v7x
_TARGET_BLOCK_BYTES = 2 * 1024 * 1024      # ~2 MiB emb tiles -> ~85%+ of HBM roofline
                                           # and 2in+2out buffers ~8 MiB total


def _choose_seq_tile(S: int, B: int, D: int, itemsize: int) -> int:
    """Pick a sequence-tile length TS.

    Constraints:
      * emb/out block (TS, B, D): last two dims equal the full dims -> always ok.
      * pe block (TS, D): TS must be a multiple of 8 unless TS == S.
      * keep 2 in + 2 out buffers comfortably inside the scoped VMEM limit.
    """
    row_bytes = max(1, B * D * itemsize)
    ts = max(1, _TARGET_BLOCK_BYTES // row_bytes)
    if ts >= S:
        return S
    ts = max(8, (ts // 8) * 8)
    return min(ts, S)


def positional_encoding_forward(emb: jnp.ndarray,
                                pe_table: jnp.ndarray,
                                step=None) -> jnp.ndarray:
    """emb: (seq_len, batch, dim). pe_table: (max_len, dim) float32."""
    S, B, D = emb.shape
    dtype = emb.dtype
    itemsize = jnp.dtype(dtype).itemsize
    scale = math.sqrt(D)

    ts = _choose_seq_tile(S, B, D, itemsize)
    grid = (pl.cdiv(S, ts),)

    compiler_params = pltpu.CompilerParams(
        # independent seq tiles: sharded across the 2 TensorCores on v7x,
        # neutral on v5e/v6e.
        dimension_semantics=("parallel",),
        vmem_limit_bytes=_VMEM_LIMIT_BYTES,
    )

    # TODO(synk): for D (and B*D) not a multiple of 128 the stores are masked
    # (partial vregs); a lane-dense (S, B*D) reshape path would need a B-times
    # larger pe operand, so it is intentionally not applied here.

    if step is None:
        # Encode path: add rows 0..S-1 of the table, tiled over S.
        pe_slice = pe_table[:S].astype(dtype)                    # (S, D)
        kernel = functools.partial(_pos_enc_kernel, scale=scale)
        return pl.pallas_call(
            kernel,
            out_shape=jax.ShapeDtypeStruct((S, B, D), dtype),
            grid=grid,
            in_specs=[
                pl.BlockSpec((ts, B, D), lambda i: (i, 0, 0)),
                pl.BlockSpec((ts, D), lambda i: (i, 0)),
            ],
            out_specs=pl.BlockSpec((ts, B, D), lambda i: (i, 0, 0)),
            # emb is dead after this op in the original module; alias it onto
            # the output (XLA copies defensively if the buffer is still live).
            input_output_aliases={0: 0},
            compiler_params=compiler_params,
        )(emb, pe_slice)

    # Decode path (stepwise): scalar-prefetch `step`, DMA exactly one pe row
    # out of the full table via the index_map -- no (S, D) broadcast in HBM.
    pe3 = pe_table.astype(dtype).reshape(pe_table.shape[0], 1, D)  # (max_len,1,D)
    step_arr = jnp.asarray([step], dtype=jnp.int32)
    kernel = functools.partial(_pos_enc_step_kernel, scale=scale)
    return pl.pallas_call(
        kernel,
        out_shape=jax.ShapeDtypeStruct((S, B, D), dtype),
        grid_spec=pltpu.PrefetchScalarGridSpec(
            num_scalar_prefetch=1,
            grid=grid,
            in_specs=[
                pl.BlockSpec((ts, B, D), lambda i, step_ref: (i, 0, 0)),
                pl.BlockSpec((1, 1, D), lambda i, step_ref: (step_ref[0], 0, 0)),
            ],
            out_specs=pl.BlockSpec((ts, B, D), lambda i, step_ref: (i, 0, 0)),
        ),
        compiler_params=compiler_params,
    )(step_arr, emb, pe3)


# ----------------------------------------------------------------------------
# test
# ----------------------------------------------------------------------------
if __name__ == "__main__":
    # Small shapes consistent with the module: (seq_len, batch, dim)
    seq_len, batch, dim, max_len = 8, 2, 32, 64

    key = jax.random.PRNGKey(0)
    emb = jax.random.normal(key, (seq_len, batch, dim), dtype=jnp.float32)
    pe_table = _build_pe_table(dim, max_len)

    # references computed up-front (before any aliased kernel call touches emb)
    ref = emb * math.sqrt(dim) + pe_table[:seq_len][:, None, :]
    emb1 = emb[:1]
    ref_step = emb1 * math.sqrt(dim) + pe_table[3][None, None, :]
    emb_bf16 = emb.astype(jnp.bfloat16)
    ref_bf16 = emb_bf16 * math.sqrt(dim) + pe_table[:seq_len].astype(
        jnp.bfloat16)[:, None, :]

    # encode path (f32)
    out = jax.block_until_ready(positional_encoding_forward(emb, pe_table))
    assert out.shape == (seq_len, batch, dim)
    assert jnp.allclose(out, ref, atol=1e-5, rtol=1e-5)

    # stepwise decode path (scalar-prefetched pe row)
    out_step = jax.block_until_ready(
        positional_encoding_forward(emb1, pe_table, step=3)
    )
    assert jnp.allclose(out_step, ref_step, atol=1e-5, rtol=1e-5)

    # bf16 path: math + store stay in bf16 (half the HBM traffic)
    out_bf16 = jax.block_until_ready(
        positional_encoding_forward(emb_bf16, pe_table)
    )
    assert out_bf16.dtype == jnp.bfloat16
    assert jnp.allclose(out_bf16.astype(jnp.float32),
                        ref_bf16.astype(jnp.float32), atol=5e-2, rtol=5e-2)

    print("KERNEL_OK")
</pallas_src>

<mosaic_0001>
module attributes {stable_mosaic.version = 11 : i64} {
  func.func @_pos_enc_kernel(%arg0: i32, %arg1: memref<8x2x32xf32, #tpu.memory_space<vmem>>, %arg2: memref<8x32xf32, #tpu.memory_space<vmem>>, %arg3: memref<8x2x32xf32, #tpu.memory_space<vmem>>) attributes {dimension_semantics = [#tpu.dimension_semantics<parallel>], iteration_bounds = array<i64: 1>, scalar_prefetch = 0 : i64, scratch_operands = 0 : i64, tpu.core_type = #tpu.core_type<tc>, window_params = [{transform_indices = @transform_0, window_bounds = array<i64: 8, 2, 32>}, {transform_indices = @transform_1, window_bounds = array<i64: 8, 32>}, {transform_indices = @transform_2, window_bounds = array<i64: 8, 2, 32>}]} {
    %c0 = arith.constant 0 : index
    %c0_0 = arith.constant 0 : index
    %c0_1 = arith.constant 0 : index
    %0 = vector.load %arg1[%c0, %c0_0, %c0_1] : memref<8x2x32xf32, #tpu.memory_space<vmem>>, vector<8x2x32xf32>
    %c0_2 = arith.constant 0 : index
    %c0_3 = arith.constant 0 : index
    %1 = vector.load %arg2[%c0_2, %c0_3] : memref<8x32xf32, #tpu.memory_space<vmem>>, vector<8x32xf32>
    %2 = vector.shape_cast %1 : vector<8x32xf32> to vector<8x1x32xf32>
    %cst = arith.constant 5.65685415 : f32
    %3 = vector.broadcast %cst : f32 to vector<8x2x32xf32>
    %4 = arith.mulf %0, %3 : vector<8x2x32xf32>
    %5 = vector.broadcast %2 : vector<8x1x32xf32> to vector<8x2x32xf32>
    %6 = arith.addf %4, %5 : vector<8x2x32xf32>
    %c0_4 = arith.constant 0 : index
    %c0_5 = arith.constant 0 : index
    %c0_6 = arith.constant 0 : index
    %7 = vector.load %arg3[%c0_4, %c0_5, %c0_6] : memref<8x2x32xf32, #tpu.memory_space<vmem>>, vector<8x2x32xf32>
    tpu.vector_store %arg3[%c0_4, %c0_5, %c0_6], %6 {strides = array<i32>} : memref<8x2x32xf32, #tpu.memory_space<vmem>>, vector<8x2x32xf32>,
    return
  }
  func.func @transform_0(%arg0: i32) -> (i32, i32, i32) {
    %c0_i32 = arith.constant 0 : i32
    %c0_i32_0 = arith.constant 0 : i32
    %c0_i32_1 = arith.constant 0 : i32
    return %arg0, %c0_i32, %c0_i32_0 : i32, i32, i32
  }
  func.func @transform_1(%arg0: i32) -> (i32, i32) {
    %c0_i32 = arith.constant 0 : i32
    %c0_i32_0 = arith.constant 0 : i32
    return %arg0, %c0_i32 : i32, i32
  }
  func.func @transform_2(%arg0: i32) -> (i32, i32, i32) {
    %c0_i32 = arith.constant 0 : i32
    %c0_i32_0 = arith.constant 0 : i32
    %c0_i32_1 = arith.constant 0 : i32
    return %arg0, %c0_i32, %c0_i32_0 : i32, i32, i32
  }
}

</mosaic_0001>

<llo_original>
// kernel: tpu_custom_call.1
$region0: #{tpu_custom_call.1}
  #allocation0 [shape = 'u32[]', space=smem, size = 0x4, offset = 0x4, fixed_abs, tag = 'smem constant byte address 0x4 - core index']
  #allocation1 [shape = 'u32[144,128]{1,0:T(1,128)}', space=vmem, size = 0x12000, scoped, tag = 'internal scratch']
  %s0 = inlined_call_operand.hbm [shape: f32[8,2,32], index: 0, kind: input, shape index: {}, may-alias: {0,2}]
  %s1 = inlined_call_operand.vmem [shape: f32[8,32], index: 1, kind: input, shape index: {}]
  %s2 = inlined_call_operand.hbm [shape: f32[8,2,32], index: 2, kind: output, shape index: {}, may-alias: {0,2}]
  %s3 = sld [smem:[#allocation0]]
  $region22: #{tpu_custom_call.1} parent=0
    _
  %s5 = ssub.s32 1, %s3
  %s6 = scalar_select 0, %s5, %s3
  $region1: #{tpu_custom_call.1} parent=0
    #allocation2 [shape = 'u8[8192]{0}', space=vmem, size = 0x2000, scoped, tag = 'input window, operand 0, single buffered']
    #allocation3 [shape = 's32[1]{0}', space=sflag, size = 0x4, scoped, tag = 'scoped memory for tpu_custom_call.1']
    #allocation4 [shape = 's32[1]{0}', space=sflag, size = 0x4, scoped, tag = 'scoped memory for tpu_custom_call.1']
    #allocation5 [shape = 'u8[8192]{0}', space=vmem, size = 0x2000, scoped, tag = 'output window, operand 0, single buffered']
    %7 = vsyncpa [#allocation3], 0
    %8 = vsyncpa [#allocation4], 0
    // Predicated region
    $region2: #{tpu_custom_call.1} parent=1 // pred_check
      _
    $region3: #{tpu_custom_call.1} parent=1 // pred_check_branch
      %10 = sbr.rel (0) target = $region5
    $region4: #{tpu_custom_call.1} parent=1 // pred_region
      %s12 = ssub.s32 256, 256
      %13 = vsyncadd [#allocation3], %s12
      %s14 = sshll.u32 [#allocation2], 4
      %s15 = int_to_ptr.vmem [resolvable:$true] %s14
      %20 = dma.hbm_to_vmem [thread:$0]  %s0, 256, %s15, [#allocation3], 32, 32, 2
    $region5: #{tpu_custom_call.1} parent=1 // pred_fallthru
      _
    // Predicated region
    $region6: #{tpu_custom_call.1} parent=1 // pred_check
      _
    $region7: #{tpu_custom_call.1} parent=1 // pred_check_branch
      %22 = sbr.rel (0) target = $region9
    $region8: #{tpu_custom_call.1} parent=1 // pred_region
      _
    $region9: #{tpu_custom_call.1} parent=1 // pred_fallthru
      _
    // Predicated region
    $region10: #{tpu_custom_call.1} parent=1 // pred_check
      _
    $region11: #{tpu_custom_call.1} parent=1 // pred_check_branch
      %24 = sbr.rel (0) target = $region13
    $region12: #{tpu_custom_call.1} parent=1 // pred_region
      %25 = dma.done [#allocation3], 256
    $region13: #{tpu_custom_call.1} parent=1 // pred_fallthru
      _
    %v26 = vld [vmem:[#allocation2] sm:$0x3]
    %v27 = vld [vmem:[#allocation2 + $0x2] sm:$0x3]
    %v28 = vld [vmem:[#allocation2 + $0x4] sm:$0x3]
    %v29 = vld [vmem:[#allocation2 + $0x6] sm:$0x3]
    %v30 = vld [vmem:[#allocation2 + $0x8] sm:$0x3]
    %v31 = vld [vmem:[#allocation2 + $0xa] sm:$0x3]
    %v32 = vld [vmem:[#allocation2 + $0xc] sm:$0x3]
    %v33 = vld [vmem:[#allocation2 + $0xe] sm:$0x3]
    %v34 = vld [vmem:[%s1] sm:$0xff]
    %v36 = vcombine.high %v34, %v34
    %v38 = vunpack.c.l.s4 1966171168
    %v39 = vunpack.c.0.s8 %v38
    %v40 = vlaneseq
    %v41 = vshrl.u32 %v40, 7
    %v42 = vsub.s32 %v39, %v41
    %v43 = vrot.slane %v34, %v42
    %v45 = vunpack.c.l.s4 1966171168
    %v46 = vunpack.c.0.s8 %v45
    %v47 = vlaneseq
    %v48 = vshrl.u32 %v47, 7
    %v49 = vsub.s32 %v46, %v48
    %v50 = vrot.slane %v36, %v49
    %v51 = vcombine.high %v43, %v43
    %v52 = vcombine.high %v50, %v50
    %v54 = vunpack.c.l.s4 1966171168
    %v55 = vunpack.c.0.s8 %v54
    %v56 = vlaneseq
    %v57 = vshrl.u32 %v56, 7
    %v58 = vsub.s32 %v55, %v57
    %v59 = vrot.slane %v43, %v58
    %v61 = vunpack.c.l.s4 1966171168
    %v62 = vunpack.c.0.s8 %v61
    %v63 = vlaneseq
    %v64 = vshrl.u32 %v63, 7
    %v65 = vsub.s32 %v62, %v64
    %v66 = vrot.slane %v50, %v65
    %v68 = vunpack.c.l.s4 1966171168
    %v69 = vunpack.c.0.s8 %v68
    %v70 = vlaneseq
    %v71 = vshrl.u32 %v70, 7
    %v72 = vsub.s32 %v69, %v71
    %v73 = vrot.slane %v51, %v72
    %v75 = vunpack.c.l.s4 1966171168
    %v76 = vunpack.c.0.s8 %v75
    %v77 = vlaneseq
    %v78 = vshrl.u32 %v77, 7
    %v79 = vsub.s32 %v76, %v78
    %v80 = vrot.slane %v52, %v79
    %v81 = vcombine.high %v59, %v59
    %v82 = vcombine.high %v66, %v66
    %v83 = vcombine.high %v73, %v73
    %v84 = vcombine.high %v80, %v80
    %v85 = vmul.f32 %v26, 5.656854
    %v86 = vmul.f32 %v27, 5.656854
    %v87 = vmul.f32 %v28, 5.656854
    %v88 = vmul.f32 %v29, 5.656854
    %v89 = vmul.f32 %v30, 5.656854
    %v90 = vmul.f32 %v31, 5.656854
    %v91 = vmul.f32 %v32, 5.656854
    %v92 = vmul.f32 %v33, 5.656854
    %v93 = vlaneseq
    %v94 = vshrl.u32 %v93, 7
    %v95 = vsub.s32 0, %v94
    %v96 = vrot.slane %v59, %v95
    %v97 = vlaneseq
    %v98 = vshrl.u32 %v97, 7
    %v99 = vsub.s32 0, %v98
    %v100 = vrot.slane %v73, %v99
    %v101 = vlaneseq
    %v102 = vshrl.u32 %v101, 7
    %v103 = vsub.s32 0, %v102
    %v104 = vrot.slane %v81, %v103
    %v105 = vlaneseq
    %v106 = vshrl.u32 %v105, 7
    %v107 = vsub.s32 0, %v106
    %v108 = vrot.slane %v83, %v107
    %v109 = vlaneseq
    %v110 = vshrl.u32 %v109, 7
    %v111 = vsub.s32 0, %v110
    %v112 = vrot.slane %v66, %v111
    %v113 = vlaneseq
    %v114 = vshrl.u32 %v113, 7
    %v115 = vsub.s32 0, %v114
    %v116 = vrot.slane %v80, %v115
    %v117 = vlaneseq
    %v118 = vshrl.u32 %v117, 7
    %v119 = vsub.s32 0, %v118
    %v120 = vrot.slane %v82, %v119
    %v121 = vlaneseq
    %v122 = vshrl.u32 %v121, 7
    %v123 = vsub.s32 0, %v122
    %v124 = vrot.slane %v84, %v123
    %v133 = vadd.f32 %v85, %v96
    %v134 = vadd.f32 %v86, %v100
    %v135 = vadd.f32 %v87, %v104
    %v136 = vadd.f32 %v88, %v108
    %v137 = vadd.f32 %v89, %v112
    %v138 = vadd.f32 %v90, %v116
    %v139 = vadd.f32 %v91, %v120
    %v140 = vadd.f32 %v92, %v124
    %vm141 = vcmask 254976
    %142 = vst.msk [vmem:[#allocation5] sm:$0x3] %vm141, %v133
    %143 = vst.msk [vmem:[#allocation5 + $0x2] sm:$0x3] %vm141, %v134
    %144 = vst.msk [vmem:[#allocation5 + $0x4] sm:$0x3] %vm141, %v135
    %145 = vst.msk [vmem:[#allocation5 + $0x6] sm:$0x3] %vm141, %v136
    %146 = vst.msk [vmem:[#allocation5 + $0x8] sm:$0x3] %vm141, %v137
    %147 = vst.msk [vmem:[#allocation5 + $0xa] sm:$0x3] %vm141, %v138
    %148 = vst.msk [vmem:[#allocation5 + $0xc] sm:$0x3] %vm141, %v139
    %149 = vst.msk [vmem:[#allocation5 + $0xe] sm:$0x3] %vm141, %v140
    // Predicated region
    $region14: #{tpu_custom_call.1} parent=1 // pred_check
      _
    $region15: #{tpu_custom_call.1} parent=1 // pred_check_branch
      %151 = sbr.rel (0) target = $region17
    $region16: #{tpu_custom_call.1} parent=1 // pred_region
      %s153 = ssub.s32 256, 256
      %154 = vsyncadd [#allocation4], %s153
      %s155 = sshll.u32 [#allocation5], 4
      %s156 = int_to_ptr.vmem [resolvable:$true] %s155
      %161 = dma.vmem_to_hbm [thread:$0]  %s156, 256, %s2, [#allocation4], 32, 32, 2
    $region17: #{tpu_custom_call.1} parent=1 // pred_fallthru
      _
    // Predicated region
    $region18: #{tpu_custom_call.1} parent=1 // pred_check
      _
    $region19: #{tpu_custom_call.1} parent=1 // pred_check_branch
      %163 = sbr.rel (0) target = $region21
    $region20: #{tpu_custom_call.1} parent=1 // pred_region
      %164 = dma.done [#allocation4], 256
    $region21: #{tpu_custom_call.1} parent=1 // pred_fallthru
      _
    %165 = vsyncpa [#allocation3], 1
    %166 = vsyncpa [#allocation4], 1

</llo_original>
